<compile_context>
chip_gen: v7x
topology: tpu7x:2x2x1
jax: 0.10.0
libtpu: 0.0.40
codegen_flags: <defaults>
</compile_context>

<pallas_src>
import functools

import jax
import jax.numpy as jnp
import numpy as np
from jax.experimental import pallas as pl
from jax.experimental.pallas import tpu as pltpu


def _round_up(x, m):
    return (x + m - 1) // m * m


def _cdiv(a, b):
    return (a + b - 1) // b


def _loss_variance_kernel(x_ref, t_ref, mu_ref, cnt_ref, mom_ref, lab_ref, *,
                          num_labels, num_channels, tile_p, kper, num_pixels,
                          needs_tail_mask, use_mxu):
    # x_ref  : (C, TP)   feature tile (native dtype, upcast below)
    # t_ref  : (1, TP)   int32 instance labels for the same pixels
    # mu_ref : (C, 1)    per-(b, c) centering constant (f32)
    # cnt_ref: (L, 1)    f32 output accumulator: per-label pixel counts
    # mom_ref: (L, 2C)   f32 output accumulator: [s1 | s2] centered moments
    # lab_ref: (L, 1)    int32 scratch holding the candidate labels 1..L
    L = num_labels
    C = num_channels
    k = pl.program_id(2)

    @pl.when(k == 0)
    def _init():
        cnt_ref[...] = jnp.zeros_like(cnt_ref)
        mom_ref[...] = jnp.zeros_like(mom_ref)
        # hoisted per-step constant (label 0 = background, excluded as in torch)
        lab_ref[...] = jax.lax.broadcasted_iota(jnp.int32, (L, 1), 0) + 1

    x = x_ref[...].astype(jnp.float32)          # (C, TP), upcast per tile
    t = t_ref[...]                              # (1, TP) int32
    mu = mu_ref[...]                            # (C, 1)  f32
    labels = lab_ref[...]                       # (L, 1)  int32

    mask = t == labels                          # (L, TP) bool

    if needs_tail_mask:
        # Global pixel index of each lane; lanes past the true pixel count (or
        # whole duplicated/clamped tail blocks) contribute nothing.
        blk = pl.program_id(0) * kper + k
        start = blk * tile_p
        lane = jax.lax.broadcasted_iota(jnp.int32, (1, tile_p), 1)
        valid = (start + lane) < num_pixels     # (1, TP)
        mask = jnp.logical_and(mask, valid)
        x = jnp.where(valid, x, 0.0)            # guard against OOB garbage

    maskf = mask.astype(jnp.float32)            # {0,1}
    xc = x - mu                                 # shift-invariant centering

    # counts: XLU row-sum (rides the otherwise-idle cross-lane unit)
    cnt_ref[...] += jnp.sum(maskf, axis=1, keepdims=True)          # (L, 1)

    if use_mxu:
        # Large L / C: one fused MXU matmul for first + second moments.
        x_aug = jnp.concatenate([xc, xc * xc], axis=0)              # (2C, TP)
        dn = (((1,), (1,)), ((), ()))
        mom_ref[...] += jax.lax.dot_general(
            maskf, x_aug, dn, preferred_element_type=jnp.float32)   # (L, 2C)
    else:
        # Small L / C: pure VPU multiply + XLU lane-reduce per channel avoids
        # the weight-reload-bound tall-skinny MXU matmul.
        x2 = xc * xc
        cols = [jnp.sum(maskf * xc[c:c + 1, :], axis=1, keepdims=True)
                for c in range(C)]
        cols += [jnp.sum(maskf * x2[c:c + 1, :], axis=1, keepdims=True)
                 for c in range(C)]
        mom_ref[...] += jnp.concatenate(cols, axis=1)                # (L, 2C)


def loss_variance(x, target, *, num_labels, tile_p=None):
    """x: (B, C, H, W) float, target: (B, H, W) integer instance labels."""
    B, C, H, W = x.shape
    P = H * W
    L = num_labels

    if x.dtype in (jnp.bfloat16, jnp.float16, jnp.float32):
        x_flat = x.reshape(B, C, P)                 # keep native width in HBM
    else:
        x_flat = x.reshape(B, C, P).astype(jnp.float32)

    # Per-(b, c) centering constant from a small subsample (variance is
    # shift-invariant): costs a tiny HBM read instead of a full pass over x.
    sub = min(P, 1024)
    mu = jnp.mean(x_flat[:, :, :sub].astype(jnp.float32),
                  axis=-1, keepdims=True)           # (B, C, 1)

    # int32 labels: no wrap-around risk for values outside [1, num_labels].
    t_flat = target.reshape(B, 1, P).astype(jnp.int32)

    # ---- tile_p from a VMEM budget ------------------------------------------
    x_item = x_flat.dtype.itemsize
    l_pad = _round_up(L, 8)
    try:
        vmem_cap = int(pltpu.get_tpu_info().vmem_capacity_bytes)
    except Exception:
        vmem_cap = 64 * 1024 * 1024                 # conservative (v7x physical)
    vmem_limit = int(vmem_cap * 0.8)
    budget = int(vmem_cap * 0.45)
    bytes_per_px = (2 * C * x_item                  # double-buffered x tile
                    + 2 * 4                         # double-buffered int32 labels
                    + 4 * (3 * C + l_pad + 2))      # f32 temporaries (x, xc, xc^2, mask, valid)
    if tile_p is None:
        tile_p = max(128, (min(65536, budget // max(bytes_per_px, 1)) // 128) * 128)
    tile_p = _round_up(tile_p, 128)
    tile_p = min(tile_p, _round_up(P, 128))

    num_k_total = _cdiv(P, tile_p)                  # pixel blocks covering P
    S = 2 if num_k_total >= 2 else 1                # 2-way split keeps both v7x TCs busy
    kper = _cdiv(num_k_total, S)
    needs_tail_mask = (S * kper * tile_p != P)
    overhang = S * kper > num_k_total

    def pix_idx(s, k):
        idx = s * kper + k
        if overhang:
            idx = jnp.minimum(idx, num_k_total - 1)  # clamped blocks are fully masked in-kernel
        return idx

    use_mxu = (L > 16) or (C > 8)

    kernel = functools.partial(
        _loss_variance_kernel,
        num_labels=L, num_channels=C, tile_p=tile_p, kper=kper,
        num_pixels=P, needs_tail_mask=needs_tail_mask, use_mxu=use_mxu)

    cnt, mom = pl.pallas_call(
        kernel,
        out_shape=(jax.ShapeDtypeStruct((S, B, L, 1), jnp.float32),
                   jax.ShapeDtypeStruct((S, B, L, 2 * C), jnp.float32)),
        grid_spec=pltpu.PrefetchScalarGridSpec(
            num_scalar_prefetch=0,
            grid=(S, B, kper),
            in_specs=[
                pl.BlockSpec((None, C, tile_p),
                             lambda s, b, k: (b, 0, pix_idx(s, k))),
                pl.BlockSpec((None, 1, tile_p),
                             lambda s, b, k: (b, 0, pix_idx(s, k))),
                pl.BlockSpec((None, C, 1), lambda s, b, k: (b, 0, 0)),
            ],
            out_specs=[
                pl.BlockSpec((None, None, L, 1), lambda s, b, k: (s, b, 0, 0)),
                pl.BlockSpec((None, None, L, 2 * C), lambda s, b, k: (s, b, 0, 0)),
            ],
            scratch_shapes=[pltpu.VMEM((L, 1), jnp.int32)],
        ),
        compiler_params=pltpu.CompilerParams(
            dimension_semantics=("parallel", "parallel", "arbitrary"),
            vmem_limit_bytes=vmem_limit),
    )(x_flat, t_flat, mu)

    # ---- tiny O(B*L*C) combine + finalize (wrapper glue) ---------------------
    counts = jnp.sum(cnt[..., 0], axis=0)            # (B, L)
    s1 = jnp.sum(mom[..., :C], axis=0)               # (B, L, C)
    s2 = jnp.sum(mom[..., C:], axis=0)               # (B, L, C)
    n = counts[..., None]                            # (B, L, 1)
    # unbiased variance (torch.var default correction=1), centered moments
    var = (s2 - s1 * s1 / jnp.maximum(n, 1.0)) / jnp.maximum(n - 1.0, 1.0)
    var = jnp.maximum(var, 0.0)
    var_sum = jnp.sum(var, axis=-1)                  # (B, L)
    per_label = jnp.where(counts > 1.0, var_sum, 0.0)   # size-1 instances skipped
    sum_var = jnp.sum(per_label, axis=-1)            # (B,)
    num_unique = jnp.sum((counts > 0.0).astype(jnp.float32), axis=-1)
    return jnp.mean(sum_var / (num_unique + 1e-8))


def _reference_loss(x, target, num_labels):
    """Pure-numpy mirror of the PyTorch forward (for verification)."""
    x = np.asarray(x)
    target = np.asarray(target)
    B, C, H, W = x.shape
    loss = 0.0
    for k in range(B):
        tk = target[k].reshape(-1)
        xk = x[k].reshape(C, -1)
        uniq = [v for v in np.unique(tk) if v != 0]
        sum_var = 0.0
        for v in uniq:
            inst = xk[:, tk == v]
            if inst.shape[1] > 1:
                sum_var += inst.var(axis=1, ddof=1).sum()
        loss += sum_var / (len(uniq) + 1e-8)
    return loss / B


if __name__ == "__main__":
    NUM_LABELS = 8  # nonzero instance labels assumed to lie in [1, NUM_LABELS]
    key = jax.random.PRNGKey(0)
    kx, kt, kx2, kt2 = jax.random.split(key, 4)

    # Case 1: B=2, even pixel coverage; exercises the 2-way pixel split and
    # the per-(split, batch) accumulation path (grid = (2, 2, 1) at tile_p=128).
    B, C, H, W = 2, 4, 16, 16
    x = jax.random.normal(kx, (B, C, H, W), dtype=jnp.float32)
    target = jax.random.randint(kt, (B, H, W), 0, NUM_LABELS + 1, dtype=jnp.int32)
    out = jax.block_until_ready(
        loss_variance(x, target, num_labels=NUM_LABELS, tile_p=128))
    ref = _reference_loss(x, target, NUM_LABELS)
    np.testing.assert_allclose(np.asarray(out), ref, rtol=1e-4, atol=1e-5)

    # Case 2: B=1 with a ragged tail (H*W = 272 not a multiple of tile_p);
    # exercises the B==1 two-core split, the in-kernel tail masking, and the
    # clamped overhang block.
    B2, H2, W2 = 1, 16, 17
    x2 = jax.random.normal(kx2, (B2, C, H2, W2), dtype=jnp.float32)
    target2 = jax.random.randint(kt2, (B2, H2, W2), 0, NUM_LABELS + 1,
                                 dtype=jnp.int32)
    out2 = jax.block_until_ready(
        loss_variance(x2, target2, num_labels=NUM_LABELS, tile_p=128))
    ref2 = _reference_loss(x2, target2, NUM_LABELS)
    np.testing.assert_allclose(np.asarray(out2), ref2, rtol=1e-4, atol=1e-5)

    print("KERNEL_OK")
</pallas_src>

<mosaic_0001>
module attributes {stable_mosaic.version = 11 : i64} {
  func.func @_loss_variance_kernel(%arg0: i32, %arg1: i32, %arg2: i32, %arg3: memref<1x4x128xf32, #tpu.memory_space<vmem>>, %arg4: memref<1x1x128xi32, #tpu.memory_space<vmem>>, %arg5: memref<1x4x1xf32, #tpu.memory_space<vmem>>, %arg6: memref<1x1x8x1xf32, #tpu.memory_space<vmem>>, %arg7: memref<1x1x8x8xf32, #tpu.memory_space<vmem>>, %arg8: memref<8x1xi32, #tpu.memory_space<vmem>>) attributes {dimension_semantics = [#tpu.dimension_semantics<parallel>, #tpu.dimension_semantics<parallel>, #tpu.dimension_semantics<arbitrary>], iteration_bounds = array<i64: 2, 2, 1>, scalar_prefetch = 0 : i64, scratch_operands = 1 : i64, tpu.core_type = #tpu.core_type<tc>, window_params = [{transform_indices = @transform_0, window_bounds = array<i64: 1, 4, 128>}, {transform_indices = @transform_1, window_bounds = array<i64: 1, 1, 128>}, {transform_indices = @transform_2, window_bounds = array<i64: 1, 4, 1>}, {transform_indices = @transform_3, window_bounds = array<i64: 1, 1, 8, 1>}, {transform_indices = @transform_4, window_bounds = array<i64: 1, 1, 8, 8>}]} {
    %c0_i32 = arith.constant 0 : i32
    %0 = arith.cmpi eq, %arg2, %c0_i32 : i32
    %1 = arith.extui %0 : i1 to i32
    %c0_i32_0 = arith.constant 0 : i32
    %2 = arith.cmpi ne, %1, %c0_i32_0 : i32
    scf.if %2 {
      %cst_35 = arith.constant 0.000000e+00 : f32
      %73 = vector.broadcast %cst_35 : f32 to vector<8x1xf32>
      %c0_36 = arith.constant 0 : index
      %c0_37 = arith.constant 0 : index
      %c0_38 = arith.constant 0 : index
      %c0_39 = arith.constant 0 : index
      %74 = vector.load %arg6[%c0_36, %c0_37, %c0_38, %c0_39] : memref<1x1x8x1xf32, #tpu.memory_space<vmem>>, vector<1x1x8x1xf32>
      %75 = vector.shape_cast %74 : vector<1x1x8x1xf32> to vector<8x1xf32>
      %76 = vector.shape_cast %73 : vector<8x1xf32> to vector<1x1x8x1xf32>
      tpu.vector_store %arg6[%c0_36, %c0_37, %c0_38, %c0_39], %76 {strides = array<i32>} : memref<1x1x8x1xf32, #tpu.memory_space<vmem>>, vector<1x1x8x1xf32>,
      %cst_40 = arith.constant 0.000000e+00 : f32
      %77 = vector.broadcast %cst_40 : f32 to vector<8x8xf32>
      %c0_41 = arith.constant 0 : index
      %c0_42 = arith.constant 0 : index
      %c0_43 = arith.constant 0 : index
      %c0_44 = arith.constant 0 : index
      %78 = vector.load %arg7[%c0_41, %c0_42, %c0_43, %c0_44] : memref<1x1x8x8xf32, #tpu.memory_space<vmem>>, vector<1x1x8x8xf32>
      %79 = vector.shape_cast %78 : vector<1x1x8x8xf32> to vector<8x8xf32>
      %80 = vector.shape_cast %77 : vector<8x8xf32> to vector<1x1x8x8xf32>
      tpu.vector_store %arg7[%c0_41, %c0_42, %c0_43, %c0_44], %80 {strides = array<i32>} : memref<1x1x8x8xf32, #tpu.memory_space<vmem>>, vector<1x1x8x8xf32>,
      %81 = tpu.iota {dimensions = array<i32: 0>} : vector<8x1xi32>
      %c1_i32 = arith.constant 1 : i32
      %82 = vector.broadcast %c1_i32 : i32 to vector<8x1xi32>
      %83 = arith.addi %81, %82 : vector<8x1xi32>
      %c0_45 = arith.constant 0 : index
      %c0_46 = arith.constant 0 : index
      %84 = vector.load %arg8[%c0_45, %c0_46] : memref<8x1xi32, #tpu.memory_space<vmem>>, vector<8x1xi32>
      tpu.vector_store %arg8[%c0_45, %c0_46], %83 {strides = array<i32>} : memref<8x1xi32, #tpu.memory_space<vmem>>, vector<8x1xi32>,
    } else {
    }
    %c0 = arith.constant 0 : index
    %c0_1 = arith.constant 0 : index
    %c0_2 = arith.constant 0 : index
    %3 = vector.load %arg3[%c0, %c0_1, %c0_2] : memref<1x4x128xf32, #tpu.memory_space<vmem>>, vector<1x4x128xf32>
    %4 = vector.shape_cast %3 : vector<1x4x128xf32> to vector<4x128xf32>
    %c0_3 = arith.constant 0 : index
    %c0_4 = arith.constant 0 : index
    %c0_5 = arith.constant 0 : index
    %5 = vector.load %arg4[%c0_3, %c0_4, %c0_5] : memref<1x1x128xi32, #tpu.memory_space<vmem>>, vector<1x1x128xi32>
    %6 = vector.shape_cast %5 : vector<1x1x128xi32> to vector<1x128xi32>
    %c0_6 = arith.constant 0 : index
    %c0_7 = arith.constant 0 : index
    %c0_8 = arith.constant 0 : index
    %7 = vector.load %arg5[%c0_6, %c0_7, %c0_8] : memref<1x4x1xf32, #tpu.memory_space<vmem>>, vector<1x4x1xf32>
    %8 = vector.shape_cast %7 : vector<1x4x1xf32> to vector<4x1xf32>
    %c0_9 = arith.constant 0 : index
    %c0_10 = arith.constant 0 : index
    %9 = vector.load %arg8[%c0_9, %c0_10] : memref<8x1xi32, #tpu.memory_space<vmem>>, vector<8x1xi32>
    %10 = vector.broadcast %6 : vector<1x128xi32> to vector<8x128xi32>
    %11 = vector.broadcast %9 : vector<8x1xi32> to vector<8x128xi32>
    %12 = arith.cmpi eq, %10, %11 : vector<8x128xi32>
    %13 = arith.extui %12 : vector<8x128xi1> to vector<8x128xi32>
    %14 = arith.sitofp %13 : vector<8x128xi32> to vector<8x128xf32>
    %15 = vector.broadcast %8 : vector<4x1xf32> to vector<4x128xf32>
    %16 = arith.subf %4, %15 : vector<4x128xf32>
    %c0_11 = arith.constant 0 : index
    %c0_12 = arith.constant 0 : index
    %c0_13 = arith.constant 0 : index
    %c0_14 = arith.constant 0 : index
    %17 = vector.load %arg6[%c0_11, %c0_12, %c0_13, %c0_14] : memref<1x1x8x1xf32, #tpu.memory_space<vmem>>, vector<1x1x8x1xf32>
    %18 = vector.shape_cast %17 : vector<1x1x8x1xf32> to vector<8x1xf32>
    %cst = arith.constant dense<0.000000e+00> : vector<8xf32>
    %19 = vector.multi_reduction <add>, %14, %cst [1] : vector<8x128xf32> to vector<8xf32>
    %20 = vector.shape_cast %19 : vector<8xf32> to vector<8x1xf32>
    %21 = arith.addf %18, %20 : vector<8x1xf32>
    %c0_15 = arith.constant 0 : index
    %c0_16 = arith.constant 0 : index
    %c0_17 = arith.constant 0 : index
    %c0_18 = arith.constant 0 : index
    %22 = vector.load %arg6[%c0_15, %c0_16, %c0_17, %c0_18] : memref<1x1x8x1xf32, #tpu.memory_space<vmem>>, vector<1x1x8x1xf32>
    %23 = vector.shape_cast %22 : vector<1x1x8x1xf32> to vector<8x1xf32>
    %24 = vector.shape_cast %21 : vector<8x1xf32> to vector<1x1x8x1xf32>
    tpu.vector_store %arg6[%c0_15, %c0_16, %c0_17, %c0_18], %24 {strides = array<i32>} : memref<1x1x8x1xf32, #tpu.memory_space<vmem>>, vector<1x1x8x1xf32>,
    %25 = arith.mulf %16, %16 : vector<4x128xf32>
    %26 = vector.extract_strided_slice %16 {offsets = [0, 0], sizes = [1, 128], strides = [1, 1]} : vector<4x128xf32> to vector<1x128xf32>
    %27 = vector.broadcast %26 : vector<1x128xf32> to vector<8x128xf32>
    %28 = arith.mulf %14, %27 : vector<8x128xf32>
    %cst_19 = arith.constant dense<0.000000e+00> : vector<8xf32>
    %29 = vector.multi_reduction <add>, %28, %cst_19 [1] : vector<8x128xf32> to vector<8xf32>
    %30 = vector.shape_cast %29 : vector<8xf32> to vector<8x1xf32>
    %31 = vector.extract_strided_slice %16 {offsets = [1, 0], sizes = [1, 128], strides = [1, 1]} : vector<4x128xf32> to vector<1x128xf32>
    %32 = vector.broadcast %31 : vector<1x128xf32> to vector<8x128xf32>
    %33 = arith.mulf %14, %32 : vector<8x128xf32>
    %cst_20 = arith.constant dense<0.000000e+00> : vector<8xf32>
    %34 = vector.multi_reduction <add>, %33, %cst_20 [1] : vector<8x128xf32> to vector<8xf32>
    %35 = vector.shape_cast %34 : vector<8xf32> to vector<8x1xf32>
    %36 = vector.extract_strided_slice %16 {offsets = [2, 0], sizes = [1, 128], strides = [1, 1]} : vector<4x128xf32> to vector<1x128xf32>
    %37 = vector.broadcast %36 : vector<1x128xf32> to vector<8x128xf32>
    %38 = arith.mulf %14, %37 : vector<8x128xf32>
    %cst_21 = arith.constant dense<0.000000e+00> : vector<8xf32>
    %39 = vector.multi_reduction <add>, %38, %cst_21 [1] : vector<8x128xf32> to vector<8xf32>
    %40 = vector.shape_cast %39 : vector<8xf32> to vector<8x1xf32>
    %41 = vector.extract_strided_slice %16 {offsets = [3, 0], sizes = [1, 128], strides = [1, 1]} : vector<4x128xf32> to vector<1x128xf32>
    %42 = vector.broadcast %41 : vector<1x128xf32> to vector<8x128xf32>
    %43 = arith.mulf %14, %42 : vector<8x128xf32>
    %cst_22 = arith.constant dense<0.000000e+00> : vector<8xf32>
    %44 = vector.multi_reduction <add>, %43, %cst_22 [1] : vector<8x128xf32> to vector<8xf32>
    %45 = vector.shape_cast %44 : vector<8xf32> to vector<8x1xf32>
    %46 = vector.extract_strided_slice %25 {offsets = [0, 0], sizes = [1, 128], strides = [1, 1]} : vector<4x128xf32> to vector<1x128xf32>
    %47 = vector.broadcast %46 : vector<1x128xf32> to vector<8x128xf32>
    %48 = arith.mulf %14, %47 : vector<8x128xf32>
    %cst_23 = arith.constant dense<0.000000e+00> : vector<8xf32>
    %49 = vector.multi_reduction <add>, %48, %cst_23 [1] : vector<8x128xf32> to vector<8xf32>
    %50 = vector.shape_cast %49 : vector<8xf32> to vector<8x1xf32>
    %51 = vector.extract_strided_slice %25 {offsets = [1, 0], sizes = [1, 128], strides = [1, 1]} : vector<4x128xf32> to vector<1x128xf32>
    %52 = vector.broadcast %51 : vector<1x128xf32> to vector<8x128xf32>
    %53 = arith.mulf %14, %52 : vector<8x128xf32>
    %cst_24 = arith.constant dense<0.000000e+00> : vector<8xf32>
    %54 = vector.multi_reduction <add>, %53, %cst_24 [1] : vector<8x128xf32> to vector<8xf32>
    %55 = vector.shape_cast %54 : vector<8xf32> to vector<8x1xf32>
    %56 = vector.extract_strided_slice %25 {offsets = [2, 0], sizes = [1, 128], strides = [1, 1]} : vector<4x128xf32> to vector<1x128xf32>
    %57 = vector.broadcast %56 : vector<1x128xf32> to vector<8x128xf32>
    %58 = arith.mulf %14, %57 : vector<8x128xf32>
    %cst_25 = arith.constant dense<0.000000e+00> : vector<8xf32>
    %59 = vector.multi_reduction <add>, %58, %cst_25 [1] : vector<8x128xf32> to vector<8xf32>
    %60 = vector.shape_cast %59 : vector<8xf32> to vector<8x1xf32>
    %61 = vector.extract_strided_slice %25 {offsets = [3, 0], sizes = [1, 128], strides = [1, 1]} : vector<4x128xf32> to vector<1x128xf32>
    %62 = vector.broadcast %61 : vector<1x128xf32> to vector<8x128xf32>
    %63 = arith.mulf %14, %62 : vector<8x128xf32>
    %cst_26 = arith.constant dense<0.000000e+00> : vector<8xf32>
    %64 = vector.multi_reduction <add>, %63, %cst_26 [1] : vector<8x128xf32> to vector<8xf32>
    %65 = vector.shape_cast %64 : vector<8xf32> to vector<8x1xf32>
    %c0_27 = arith.constant 0 : index
    %c0_28 = arith.constant 0 : index
    %c0_29 = arith.constant 0 : index
    %c0_30 = arith.constant 0 : index
    %66 = vector.load %arg7[%c0_27, %c0_28, %c0_29, %c0_30] : memref<1x1x8x8xf32, #tpu.memory_space<vmem>>, vector<1x1x8x8xf32>
    %67 = vector.shape_cast %66 : vector<1x1x8x8xf32> to vector<8x8xf32>
    %68 = tpu.concatenate %30, %35, %40, %45, %50, %55, %60, %65 in 1 : vector<8x1xf32>, vector<8x1xf32>, vector<8x1xf32>, vector<8x1xf32>, vector<8x1xf32>, vector<8x1xf32>, vector<8x1xf32>, vector<8x1xf32> -> vector<8x8xf32>
    %69 = arith.addf %67, %68 : vector<8x8xf32>
    %c0_31 = arith.constant 0 : index
    %c0_32 = arith.constant 0 : index
    %c0_33 = arith.constant 0 : index
    %c0_34 = arith.constant 0 : index
    %70 = vector.load %arg7[%c0_31, %c0_32, %c0_33, %c0_34] : memref<1x1x8x8xf32, #tpu.memory_space<vmem>>, vector<1x1x8x8xf32>
    %71 = vector.shape_cast %70 : vector<1x1x8x8xf32> to vector<8x8xf32>
    %72 = vector.shape_cast %69 : vector<8x8xf32> to vector<1x1x8x8xf32>
    tpu.vector_store %arg7[%c0_31, %c0_32, %c0_33, %c0_34], %72 {strides = array<i32>} : memref<1x1x8x8xf32, #tpu.memory_space<vmem>>, vector<1x1x8x8xf32>,
    return
  }
  func.func @transform_0(%arg0: i32, %arg1: i32, %arg2: i32) -> (i32, i32, i32) {
    %c1_i32 = arith.constant 1 : i32
    %0 = arith.muli %arg0, %c1_i32 : i32
    %1 = arith.addi %0, %arg2 : i32
    %c0_i32 = arith.constant 0 : i32
    %c0_i32_0 = arith.constant 0 : i32
    return %arg1, %c0_i32, %1 : i32, i32, i32
  }
  func.func @transform_1(%arg0: i32, %arg1: i32, %arg2: i32) -> (i32, i32, i32) {
    %c1_i32 = arith.constant 1 : i32
    %0 = arith.muli %arg0, %c1_i32 : i32
    %1 = arith.addi %0, %arg2 : i32
    %c0_i32 = arith.constant 0 : i32
    %c0_i32_0 = arith.constant 0 : i32
    return %arg1, %c0_i32, %1 : i32, i32, i32
  }
  func.func @transform_2(%arg0: i32, %arg1: i32, %arg2: i32) -> (i32, i32, i32) {
    %c0_i32 = arith.constant 0 : i32
    %c0_i32_0 = arith.constant 0 : i32
    %c0_i32_1 = arith.constant 0 : i32
    return %arg1, %c0_i32, %c0_i32_0 : i32, i32, i32
  }
  func.func @transform_3(%arg0: i32, %arg1: i32, %arg2: i32) -> (i32, i32, i32, i32) {
    %c0_i32 = arith.constant 0 : i32
    %c0_i32_0 = arith.constant 0 : i32
    %c0_i32_1 = arith.constant 0 : i32
    return %arg0, %arg1, %c0_i32, %c0_i32_0 : i32, i32, i32, i32
  }
  func.func @transform_4(%arg0: i32, %arg1: i32, %arg2: i32) -> (i32, i32, i32, i32) {
    %c0_i32 = arith.constant 0 : i32
    %c0_i32_0 = arith.constant 0 : i32
    %c0_i32_1 = arith.constant 0 : i32
    return %arg0, %arg1, %c0_i32, %c0_i32_0 : i32, i32, i32, i32
  }
}

</mosaic_0001>

<llo_original>
// kernel: tpu_custom_call.1
$region0: #{tpu_custom_call.1}
  #allocation0 [shape = 'u32[]', space=smem, size = 0x4, offset = 0x4, fixed_abs, tag = 'smem constant byte address 0x4 - core index']
  #allocation1 [shape = 'u32[144,128]{1,0:T(1,128)}', space=vmem, size = 0x12000, scoped, tag = 'internal scratch']
  #allocation2 [shape = 's32[8,1]{1,0:T(8,128)}', space=vmem, size = 0x1000, scoped, tag = 'scratch operand']
  %s0 = inlined_call_operand.hbm [shape: f32[2,4,256], index: 0, kind: input, shape index: {}]
  %s1 = inlined_call_operand.vmem [shape: s32[2,1,256], index: 1, kind: input, shape index: {}]
  %s2 = inlined_call_operand.vmem [shape: f32[2,4,1], index: 2, kind: input, shape index: {}]
  %s3 = inlined_call_operand.vmem [shape: f32[2,2,8,1], index: 3, kind: output, shape index: {0}]
  %s4 = inlined_call_operand.hbm [shape: f32[2,2,8,8], index: 4, kind: output, shape index: {1}]
  %5 = xla_tuple %s3, %s4
  %s6 = sld [smem:[#allocation0]]
  $region61: #{tpu_custom_call.1} parent=0
    _
  %s8 = ssub.s32 1, %s6
  %s9 = scalar_select 0, %s8, %s6
  $region1: #{tpu_custom_call.1} parent=0
    #allocation3 [shape = 'u8[4096]{0}', space=vmem, size = 0x1000, scoped, tag = 'input window, operand 0']
    #allocation4 [shape = 's32[2]{0}', space=sflag, size = 0x8, scoped, tag = 'scoped memory for tpu_custom_call.1']
    #allocation5 [shape = 's32[2]{0}', space=sflag, size = 0x8, scoped, tag = 'scoped memory for tpu_custom_call.1']
    #allocation6 [shape = 'u8[8192]{0}', space=vmem, size = 0x2000, scoped, tag = 'output window, operand 1']
    %10 = vsyncpa [#allocation4], 0
    %s11 = scalar_lea.sflag [#allocation4], 1
    %12 = vsyncpa %s11, 0
    %13 = vsyncpa [#allocation5], 0
    %s14 = scalar_lea.sflag [#allocation5], 1
    %15 = vsyncpa %s14, 0
    loop: start=0, step=1, limit=6
    $region2: #{tpu_custom_call.1} parent=1 // loop_pre_header
      _
    $region3: #{tpu_custom_call.1} parent=1 // loop_header
      %s17 = sphi 0, %s21
      %p18 = scmp.ge.s32.totalorder %s17, 6
      %s24 = sphi 0, %s43
      %s25 = sphi 0, %s39
      %s26 = sphi 0, %s35
      %s27 = sphi 0, %s24
      %s28 = sphi 0, %s25
      %s29 = sphi 0, %s26
      %s30 = sphi 0, %s27
      %s31 = sphi 0, %s28
      %s32 = sphi 0, %s29
      %s50 = sphi 0, %s52
      %s53 = sphi 0, %s50
      %s54 = sphi 0, %s53
      %s70 = sphi 0, %s54
      %s80 = sphi 0, %s82
      %s83 = sphi 0, %s80
      %s84 = sphi 0, %s83
      %s100 = sphi 0, %s84
      %s106 = sphi 0, %s108
      %s109 = sphi 0, %s106
      %s110 = sphi 0, %s109
      %s126 = sphi 0, %s110
      %s134 = sphi 0, %s136
      %s137 = sphi 0, %s134
      %s138 = sphi 0, %s137
      %s154 = sphi 0, %s138
      %s162 = sphi 0, %s164
      %s165 = sphi 0, %s162
      %s166 = sphi 0, %s165
      %s182 = sphi 0, %s166
    $region4: #{tpu_custom_call.1} parent=1 // loop_header_branch
      %20 = sbr.rel (%p18) target = $region8
    $region5: #{tpu_custom_call.1} parent=1 // loop_body
      %s22 = ssub.s32 %s17, 1
      %s23 = ssub.s32 %s17, 2
      %s33 = sadd.s32 1, %s26
      %p34 = scmp.ge.s32.totalorder %s33, 1
      %s35 = scalar_select %p34, 0, %s33
      %s36 = sadd.s32 1, %s25
      %s37 = scalar_select %p34, %s36, %s25
      %p38 = scmp.ge.s32.totalorder %s37, 2
      %s39 = scalar_select %p38, 0, %s37
      %s40 = sadd.s32 1, %s24
      %s41 = scalar_select %p38, %s40, %s24
      %p42 = scmp.ge.s32.totalorder %s41, 2
      %s43 = scalar_select %p42, 0, %s41
      %s44 = sadd.s32 %s24, %s26
      %s45 = sadd.s32 %s43, %s35
      %s46 = ssub.s32 %s25, %s39
      %s47 = ssub.s32 %s44, %s45
      %s48 = sor.u32 %s46, %s47
      %p49 = scmp.eq.s32.totalorder %s48, 0
      %s51 = sadd.s32 %s50, 1
      %s52 = scalar_select %p49, %s50, %s51
      %p55 = pneg %p49
      %p56 = scmp.eq.s32.totalorder %s17, 3
      %p57 = por %p55, %p56
      %p58 = scmp.ne.s32.totalorder %s50, %s53
      %p59 = scmp.eq.s32.totalorder %s17, 0
      %p60 = por %p58, %p59
      %p61 = scmp.ne.s32.totalorder %s50, %s53
      %p62 = scmp.eq.s32.totalorder %s22, 3
      %p63 = por %p61, %p62
      %p64 = scmp.ne.s32.totalorder %s53, %s54
      %p65 = scmp.eq.s32.totalorder %s22, 0
      %p66 = por %p64, %p65
      %p67 = scmp.ne.s32.totalorder %s53, %s54
      %p68 = scmp.eq.s32.totalorder %s23, 3
      %p69 = por %p67, %p68
      %p71 = scmp.ne.s32.totalorder %s54, %s70
      %p72 = scmp.eq.s32.totalorder %s23, 0
      %p73 = por %p71, %p72
      %s74 = sadd.s32 %s24, %s26
      %s75 = sadd.s32 %s43, %s35
      %s76 = ssub.s32 %s25, %s39
      %s77 = ssub.s32 %s74, %s75
      %s78 = sor.u32 %s76, %s77
      %p79 = scmp.eq.s32.totalorder %s78, 0
      %s81 = sadd.s32 %s80, 1
      %s82 = scalar_select %p79, %s80, %s81
      %p85 = pneg %p79
      %p86 = scmp.eq.s32.totalorder %s17, 3
      %p87 = por %p85, %p86
      %p88 = scmp.ne.s32.totalorder %s80, %s83
      %p89 = scmp.eq.s32.totalorder %s17, 0
      %p90 = por %p88, %p89
      %p91 = scmp.ne.s32.totalorder %s80, %s83
      %p92 = scmp.eq.s32.totalorder %s22, 3
      %p93 = por %p91, %p92
      %p94 = scmp.ne.s32.totalorder %s83, %s84
      %p95 = scmp.eq.s32.totalorder %s22, 0
      %p96 = por %p94, %p95
      %p97 = scmp.ne.s32.totalorder %s83, %s84
      %p98 = scmp.eq.s32.totalorder %s23, 3
      %p99 = por %p97, %p98
      %p101 = scmp.ne.s32.totalorder %s84, %s100
      %p102 = scmp.eq.s32.totalorder %s23, 0
      %p103 = por %p101, %p102
      %s104 = ssub.s32 %s25, %s39
      %p105 = scmp.eq.s32.totalorder %s104, 0
      %s107 = sadd.s32 %s106, 1
      %s108 = scalar_select %p105, %s106, %s107
      %p111 = pneg %p105
      %p112 = scmp.eq.s32.totalorder %s17, 3
      %p113 = por %p111, %p112
      %p114 = scmp.ne.s32.totalorder %s106, %s109
      %p115 = scmp.eq.s32.totalorder %s17, 0
      %p116 = por %p114, %p115
      %p117 = scmp.ne.s32.totalorder %s106, %s109
      %p118 = scmp.eq.s32.totalorder %s22, 3
      %p119 = por %p117, %p118
      %p120 = scmp.ne.s32.totalorder %s109, %s110
      %p121 = scmp.eq.s32.totalorder %s22, 0
      %p122 = por %p120, %p121
      %p123 = scmp.ne.s32.totalorder %s109, %s110
      %p124 = scmp.eq.s32.totalorder %s23, 3
      %p125 = por %p123, %p124
      %p127 = scmp.ne.s32.totalorder %s110, %s126
      %p128 = scmp.eq.s32.totalorder %s23, 0
      %p129 = por %p127, %p128
      %s130 = ssub.s32 %s24, %s43
      %s131 = ssub.s32 %s25, %s39
      %s132 = sor.u32 %s130, %s131
      %p133 = scmp.eq.s32.totalorder %s132, 0
      %s135 = sadd.s32 %s134, 1
      %s136 = scalar_select %p133, %s134, %s135
      %p139 = pneg %p133
      %p140 = scmp.eq.s32.totalorder %s17, 3
      %p141 = por %p139, %p140
      %p142 = scmp.ne.s32.totalorder %s134, %s137
      %p143 = scmp.eq.s32.totalorder %s17, 0
      %p144 = por %p142, %p143
      %p145 = scmp.ne.s32.totalorder %s134, %s137
      %p146 = scmp.eq.s32.totalorder %s22, 3
      %p147 = por %p145, %p146
      %p148 = scmp.ne.s32.totalorder %s137, %s138
      %p149 = scmp.eq.s32.totalorder %s22, 0
      %p150 = por %p148, %p149
      %p151 = scmp.ne.s32.totalorder %s137, %s138
      %p152 = scmp.eq.s32.totalorder %s23, 3
      %p153 = por %p151, %p152
      %p155 = scmp.ne.s32.totalorder %s138, %s154
      %p156 = scmp.eq.s32.totalorder %s23, 0
      %p157 = por %p155, %p156
      %s158 = ssub.s32 %s24, %s43
      %s159 = ssub.s32 %s25, %s39
      %s160 = sor.u32 %s158, %s159
      %p161 = scmp.eq.s32.totalorder %s160, 0
      %s163 = sadd.s32 %s162, 1
      %s164 = scalar_select %p161, %s162, %s163
      %p167 = pneg %p161
      %p168 = scmp.eq.s32.totalorder %s17, 3
      %p169 = por %p167, %p168
      %p170 = scmp.ne.s32.totalorder %s162, %s165
      %p171 = scmp.eq.s32.totalorder %s17, 0
      %p172 = por %p170, %p171
      %p173 = scmp.ne.s32.totalorder %s162, %s165
      %p174 = scmp.eq.s32.totalorder %s22, 3
      %p175 = por %p173, %p174
      %p176 = scmp.ne.s32.totalorder %s165, %s166
      %p177 = scmp.eq.s32.totalorder %s22, 0
      %p178 = por %p176, %p177
      %p179 = scmp.ne.s32.totalorder %s165, %s166
      %p180 = scmp.eq.s32.totalorder %s23, 3
      %p181 = por %p179, %p180
      %p183 = scmp.ne.s32.totalorder %s166, %s182
      %p184 = scmp.eq.s32.totalorder %s23, 0
      %p185 = por %p183, %p184
      %p186 = scmp.le.s32.totalorder 1, %s17
      %p187 = scmp.lt.s32.totalorder %s17, 5
      %p188 = pnand %p186, %p187
      %p189 = pneg %p188
      // Predicated region
      $region9: #{tpu_custom_call.1} parent=5 // pred_check
        _
      $region10: #{tpu_custom_call.1} parent=5 // pred_check_branch
        %191 = sbr.rel (%p188) target = $region12
      $region11: #{tpu_custom_call.1} parent=5 // pred_region
        %s192 = ssub.s32 %s17, 1
      $region12: #{tpu_custom_call.1} parent=5 // pred_fallthru
        _
      %p193 = scmp.lt.s32.totalorder %s17, 4
      // Predicated region
      $region13: #{tpu_custom_call.1} parent=5 // pred_check
        %p194 = pneg %p193
      $region14: #{tpu_custom_call.1} parent=5 // pred_check_branch
        %196 = sbr.rel (%p194) target = $region16
      $region15: #{tpu_custom_call.1} parent=5 // pred_region
        // Predicated region
        $region17: #{tpu_custom_call.1} parent=15 // pred_check
          %p197 = pneg %p60
        $region18: #{tpu_custom_call.1} parent=15 // pred_check_branch
          %199 = sbr.rel (%p197) target = $region20
        $region19: #{tpu_custom_call.1} parent=15 // pred_region
          %s200 = sand.u32 %s50, 1
          %s201 = scalar_lea.sflag [#allocation4], %s200
          %s202 = sand.u32 %s50, 1
          %s203 = smul.addr %s202, 4
          %s204 = scalar_lea.vmem [#allocation3], %s203
          %s205 = sadd.s32 %s24, %s26
          %s207 = ssub.s32 64, 64
          %208 = vsyncadd %s201, %s207
          %s209 = smul.addr %s25, 2
          %s210 = sadd.s32 %s205, %s209
          %s211 = smul.addr %s210, 64
          %s212 = scalar_lea.hbm %s0, %s211
          %s214 = sshll.u32 %s204, 4
          %s215 = int_to_ptr.vmem [resolvable:$true] %s214
          %217 = dma.hbm_to_vmem [thread:$0]  %s212, 64, %s215, %s201
        $region20: #{tpu_custom_call.1} parent=15 // pred_fallthru
          _
        // Predicated region
        $region21: #{tpu_custom_call.1} parent=15 // pred_check
          %p218 = pneg %p90
        $region22: #{tpu_custom_call.1} parent=15 // pred_check_branch
          %220 = sbr.rel (%p218) target = $region24
        $region23: #{tpu_custom_call.1} parent=15 // pred_region
          %s221 = sadd.s32 %s24, %s26
          %p222 = scmp.lt.s32.totalorder %s25, 1
          %s223 = scalar_select %p222, %s25, 1
          %p224 = scmp.lt.s32.totalorder %s221, 1
          %s225 = scalar_select %p224, %s221, 1
          %s226 = smul.addr %s223, 2
          %s227 = sadd.s32 %s225, %s226
          %s228 = scalar_lea.vmem %s1, %s227
          %s229 = sadd.s32 %s24, %s26
        $region24: #{tpu_custom_call.1} parent=15 // pred_fallthru
          _
        // Predicated region
        $region25: #{tpu_custom_call.1} parent=15 // pred_check
          %p230 = pneg %p116
        $region26: #{tpu_custom_call.1} parent=15 // pred_check_branch
          %232 = sbr.rel (%p230) target = $region28
        $region27: #{tpu_custom_call.1} parent=15 // pred_region
          %p233 = scmp.lt.s32.totalorder %s25, 1
          %s234 = scalar_select %p233, %s25, 1
          %s235 = smul.addr %s234, 4
          %s236 = scalar_lea.vmem %s2, %s235
        $region28: #{tpu_custom_call.1} parent=15 // pred_fallthru
          _
      $region16: #{tpu_custom_call.1} parent=5 // pred_fallthru
        _
      %p237 = scmp.le.s32.totalorder 1, %s17
      %p238 = scmp.lt.s32.totalorder %s17, 5
      %p239 = pnand %p237, %p238
      %p240 = pneg %p239
      // Predicated region
      $region29: #{tpu_custom_call.1} parent=5 // pred_check
        _
      $region30: #{tpu_custom_call.1} parent=5 // pred_check_branch
        %242 = sbr.rel (%p239) target = $region32
      $region31: #{tpu_custom_call.1} parent=5 // pred_region
        %s243 = ssub.s32 %s17, 1
        %s244 = sand.u32 %s53, 1
        %s245 = scalar_lea.sflag [#allocation4], %s244
        %s246 = sand.u32 %s53, 1
        %s247 = smul.addr %s246, 4
        %s248 = scalar_lea.vmem [#allocation3], %s247
        // Predicated region
        $region33: #{tpu_custom_call.1} parent=31 // pred_check
          %p249 = pneg %p66
        $region34: #{tpu_custom_call.1} parent=31 // pred_check_branch
          %251 = sbr.rel (%p249) target = $region36
        $region35: #{tpu_custom_call.1} parent=31 // pred_region
          %252 = dma.done %s245, 64
        $region36: #{tpu_custom_call.1} parent=31 // pred_fallthru
          _
        %s253 = sand.u32 %s53, 1
        %s254 = scalar_lea.sflag [#allocation4], %s253
        %s255 = sand.u32 %s53, 1
        %s256 = smul.addr %s255, 4
        %s257 = scalar_lea.vmem [#allocation3], %s256
        %p258 = pneg %p66
        %p259 = pneg %p63
        %s260 = sadd.s32 %s27, %s29
        %p261 = scmp.lt.s32.totalorder %s28, 1
        %s262 = scalar_select %p261, %s28, 1
        %p263 = scmp.lt.s32.totalorder %s260, 1
        %s264 = scalar_select %p263, %s260, 1
        %s265 = smul.addr %s262, 2
        %s266 = sadd.s32 %s264, %s265
        %s267 = scalar_lea.vmem %s1, %s266
        %p268 = pneg %p96
        %p269 = pneg %p93
        %p270 = scmp.lt.s32.totalorder %s28, 1
        %s271 = scalar_select %p270, %s28, 1
        %s272 = smul.addr %s271, 4
        %s273 = scalar_lea.vmem %s2, %s272
        %p274 = pneg %p122
        %p275 = pneg %p119
        %p276 = pneg %p150
        %p277 = pneg %p147
        %p278 = scmp.lt.s32.totalorder %s27, 1
        %s279 = scalar_select %p278, %s27, 1
        %p280 = scmp.lt.s32.totalorder %s28, 1
        %s281 = scalar_select %p280, %s28, 1
        %s282 = smul.addr %s279, 2
        %s283 = sadd.s32 %s281, %s282
        %s284 = smul.addr %s283, 8
        %s285 = scalar_lea.vmem %s3, %s284
        %p286 = pneg %p178
        %p287 = pneg %p175
        %s288 = sand.u32 %s165, 1
        %s289 = scalar_lea.sflag [#allocation5], %s288
        %s290 = sand.u32 %s165, 1
        %s291 = smul.addr %s290, 8
        %s292 = scalar_lea.vmem [#allocation6], %s291
        %s293 = sadd.s32 %s27, %s29
        %s294 = sadd.s32 %s27, %s29
        %p295 = scmp.lt.s32.totalorder %s28, 1
        %s296 = scalar_select %p295, %s28, 1
        %p297 = scmp.lt.s32.totalorder %s294, 1
        %s298 = scalar_select %p297, %s294, 1
        %s299 = smul.addr %s296, 2
        %s300 = sadd.s32 %s298, %s299
        %s301 = scalar_lea.vmem %s1, %s300
        %s302 = sadd.s32 %s27, %s29
        %p303 = scmp.lt.s32.totalorder %s28, 1
        %s304 = scalar_select %p303, %s28, 1
        %s305 = smul.addr %s304, 4
        %s306 = scalar_lea.vmem %s2, %s305
        %p307 = scmp.lt.s32.totalorder %s27, 1
        %s308 = scalar_select %p307, %s27, 1
        %p309 = scmp.lt.s32.totalorder %s28, 1
        %s310 = scalar_select %p309, %s28, 1
        %s311 = smul.addr %s308, 2
        %s312 = sadd.s32 %s310, %s311
        %s313 = smul.addr %s312, 8
        %s314 = scalar_lea.vmem %s3, %s313
        %p315 = scmp.eq.s32.totalorder %s29, 0
        // Predicated region
        $region37: #{tpu_custom_call.1} parent=31 // pred_check
          %p316 = pneg %p315
        $region38: #{tpu_custom_call.1} parent=31 // pred_check_branch
          %318 = sbr.rel (%p316) target = $region40
        $region39: #{tpu_custom_call.1} parent=31 // pred_region
          %vm319 = vcmask 7168
          %320 = vst.msk [vmem:[%s314] sm:$0xff] %vm319, 0.0
          %vm321 = vcmask 64512
          %322 = vst.msk [vmem:[%s292] sm:$0xff] %vm321, 0.0
          %v323 = vlaneseq
          %v324 = vshrl.u32 %v323, 7
          %v325 = vadd.s32 %v324, 1
          %326 = vst.msk [vmem:[#allocation2] sm:$0xff] %vm319, %v325
        $region40: #{tpu_custom_call.1} parent=31 // pred_fallthru
          _
        %v327 = vld [vmem:[%s248] sm:$0xf]
        %v328 = vld [vmem:[%s301] sm:$0x1]
        %v329 = vld [vmem:[%s306] sm:$0xf]
        %v330 = vld [vmem:[#allocation2] sm:$0xff]
        %v331 = vlaneseq
        %v332 = vshrl.u32 %v331, 7
        %v333 = vsub.s32 0, %v332
        %v334 = vrot.slane %v328, %v333
        %335 = vset.pattern.permute.xlu0 0
        %336 = vperm.xlu0 %335, %v330
        %v337 = vpop.permute.xlu0 %336
        %vm338 = vcmp.eq.s32.totalorder %v334, %v337
        %v339 = vsel %vm338, 1, 0
        %v340 = vcvt.s32.f32 %v339
        %342 = vset.pattern.permute.xlu0 0
        %343 = vperm.xlu0 %342, %v329
        %v344 = vpop.permute.xlu0 %343
        %v346 = vsub.f32 %v327, %v344
        %v347 = vld [vmem:[%s314] sm:$0xff]
        %348 = vadd.xlane.f32.xlu0 %v340
        %v349 = vpop.xlane.xlu0 %348
        %v350 = vadd.f32 %v347, %v349
        %vm351 = vcmask 7168
        %352 = vst.msk [vmem:[%s314] sm:$0xff] %vm351, %v350
        %v353 = vmul.f32 %v346, %v346
        %v354 = vlaneseq
        %v355 = vshrl.u32 %v354, 7
        %v356 = vsub.s32 0, %v355
        %v357 = vrot.slane %v346, %v356
        %v358 = vmul.f32 %v340, %v357
        %359 = vadd.xlane.f32.xlu0 %v358
        %v360 = vpop.xlane.xlu0 %359
        %v361 = vlaneseq
        %v362 = vshrl.u32 %v361, 7
        %v363 = vsub.s32 1, %v362
        %v364 = vrot.slane %v346, %v363
        %v365 = vmul.f32 %v340, %v364
        %366 = vadd.xlane.f32.xlu0 %v365
        %v367 = vpop.xlane.xlu0 %366
        %v368 = vlaneseq
        %v369 = vshrl.u32 %v368, 7
        %v370 = vsub.s32 2, %v369
        %v371 = vrot.slane %v346, %v370
        %v372 = vmul.f32 %v340, %v371
        %373 = vadd.xlane.f32.xlu0 %v372
        %v374 = vpop.xlane.xlu0 %373
        %v375 = vlaneseq
        %v376 = vshrl.u32 %v375, 7
        %v377 = vsub.s32 3, %v376
        %v378 = vrot.slane %v346, %v377
        %v379 = vmul.f32 %v340, %v378
        %380 = vadd.xlane.f32.xlu0 %v379
        %v381 = vpop.xlane.xlu0 %380
        %v382 = vlaneseq
        %v383 = vshrl.u32 %v382, 7
        %v384 = vsub.s32 0, %v383
        %v385 = vrot.slane %v353, %v384
        %v386 = vmul.f32 %v340, %v385
        %387 = vadd.xlane.f32.xlu0 %v386
        %v388 = vpop.xlane.xlu0 %387
        %v389 = vlaneseq
        %v390 = vshrl.u32 %v389, 7
        %v391 = vsub.s32 1, %v390
        %v392 = vrot.slane %v353, %v391
        %v393 = vmul.f32 %v340, %v392
        %394 = vadd.xlane.f32.xlu0 %v393
        %v395 = vpop.xlane.xlu0 %394
        %v396 = vlaneseq
        %v397 = vshrl.u32 %v396, 7
        %v398 = vsub.s32 2, %v397
        %v399 = vrot.slane %v353, %v398
        %v400 = vmul.f32 %v340, %v399
        %401 = vadd.xlane.f32.xlu0 %v400
        %v402 = vpop.xlane.xlu0 %401
        %v403 = vlaneseq
        %v404 = vshrl.u32 %v403, 7
        %v405 = vsub.s32 3, %v404
        %v406 = vrot.slane %v353, %v405
        %v407 = vmul.f32 %v340, %v406
        %408 = vadd.xlane.f32.xlu0 %v407
        %v409 = vpop.xlane.xlu0 %408
        %v410 = vld [vmem:[%s292] sm:$0xff]
        %v411 = vsel %vm351, %v360, %v367
        %vm412 = vcmask 15360
        %v413 = vsel %vm412, %v411, %v374
        %vm414 = vcmask 23552
        %v415 = vsel %vm414, %v413, %v381
        %vm416 = vcmask 31744
        %v417 = vsel %vm416, %v415, %v388
        %vm418 = vcmask 39936
        %v419 = vsel %vm418, %v417, %v395
        %vm420 = vcmask 48128
        %v421 = vsel %vm420, %v419, %v402
        %vm422 = vcmask 56320
        %v423 = vsel %vm422, %v421, %v409
        %v424 = vadd.f32 %v410, %v423
        %vm425 = vcmask 64512
        %426 = vst.msk [vmem:[%s292] sm:$0xff] %vm425, %v424
        %p427 = scmp.lt.s32.totalorder %s27, 1
        %s428 = scalar_select %p427, %s27, 1
        %p429 = scmp.lt.s32.totalorder %s28, 1
        %s430 = scalar_select %p429, %s28, 1
        %s431 = smul.addr %s428, 2
        %s432 = sadd.s32 %s430, %s431
        %s433 = smul.addr %s432, 8
        %s434 = scalar_lea.vmem %s3, %s433
        %s435 = sand.u32 %s165, 1
        %s436 = scalar_lea.sflag [#allocation5], %s435
        %s437 = sand.u32 %s165, 1
        %s438 = smul.addr %s437, 8
        %s439 = scalar_lea.vmem [#allocation6], %s438
        // Predicated region
        $region41: #{tpu_custom_call.1} parent=31 // pred_check
          %p440 = pneg %p147
        $region42: #{tpu_custom_call.1} parent=31 // pred_check_branch
          %442 = sbr.rel (%p440) target = $region44
        $region43: #{tpu_custom_call.1} parent=31 // pred_region
          _
        $region44: #{tpu_custom_call.1} parent=31 // pred_fallthru
          _
        // Predicated region
        $region45: #{tpu_custom_call.1} parent=31 // pred_check
          %p443 = pneg %p175
        $region46: #{tpu_custom_call.1} parent=31 // pred_check_branch
          %445 = sbr.rel (%p443) target = $region48
        $region47: #{tpu_custom_call.1} parent=31 // pred_region
          %s447 = ssub.s32 128, 128
          %448 = vsyncadd %s436, %s447
          %s449 = smul.addr %s27, 2
          %s450 = sadd.s32 %s28, %s449
          %s451 = smul.addr %s450, 128
          %s452 = scalar_lea.hbm %s4, %s451
          %s454 = sshll.u32 %s439, 4
          %s455 = int_to_ptr.vmem [resolvable:$true] %s454
          %457 = dma.vmem_to_hbm [thread:$0]  %s455, 128, %s452, %s436
        $region48: #{tpu_custom_call.1} parent=31 // pred_fallthru
          _
      $region32: #{tpu_custom_call.1} parent=5 // pred_fallthru
        _
      %p458 = scmp.le.s32.totalorder 2, %s17
      // Predicated region
      $region49: #{tpu_custom_call.1} parent=5 // pred_check
        %p459 = pneg %p458
      $region50: #{tpu_custom_call.1} parent=5 // pred_check_branch
        %461 = sbr.rel (%p459) target = $region52
      $region51: #{tpu_custom_call.1} parent=5 // pred_region
        %s462 = ssub.s32 %s17, 2
        // Predicated region
        $region53: #{tpu_custom_call.1} parent=51 // pred_check
          %p463 = pneg %p153
        $region54: #{tpu_custom_call.1} parent=51 // pred_check_branch
          %465 = sbr.rel (%p463) target = $region56
        $region55: #{tpu_custom_call.1} parent=51 // pred_region
          %p466 = scmp.lt.s32.totalorder %s30, 1
          %s467 = scalar_select %p466, %s30, 1
          %p468 = scmp.lt.s32.totalorder %s31, 1
          %s469 = scalar_select %p468, %s31, 1
          %s470 = smul.addr %s467, 2
          %s471 = sadd.s32 %s469, %s470
          %s472 = smul.addr %s471, 8
          %s473 = scalar_lea.vmem %s3, %s472
        $region56: #{tpu_custom_call.1} parent=51 // pred_fallthru
          _
        // Predicated region
        $region57: #{tpu_custom_call.1} parent=51 // pred_check
          %p474 = pneg %p181
        $region58: #{tpu_custom_call.1} parent=51 // pred_check_branch
          %476 = sbr.rel (%p474) target = $region60
        $region59: #{tpu_custom_call.1} parent=51 // pred_region
          %s477 = sand.u32 %s166, 1
          %s478 = scalar_lea.sflag [#allocation5], %s477
          %s479 = sand.u32 %s166, 1
          %s480 = smul.addr %s479, 8
          %s481 = scalar_lea.vmem [#allocation6], %s480
          %482 = dma.done %s478, 128
        $region60: #{tpu_custom_call.1} parent=51 // pred_fallthru
          _
      $region52: #{tpu_custom_call.1} parent=5 // pred_fallthru
        _
    $region6: #{tpu_custom_call.1} parent=1 // loop_footer
      %s21 = sadd.s32 1, %s17
    $region7: #{tpu_custom_call.1} parent=1 // loop_footer_branch
      %16 = sbr.rel target = $region3
    $region8: #{tpu_custom_call.1} parent=1 // loop_exit
      _
    %483 = vsyncpa [#allocation4], 1
    %s484 = scalar_lea.sflag [#allocation4], 1
    %485 = vsyncpa %s484, 1
    %486 = vsyncpa [#allocation5], 1
    %s487 = scalar_lea.sflag [#allocation5], 1
    %488 = vsyncpa %s487, 1

</llo_original>
